<compile_context>
chip_gen: v5e
topology: v5e:2x2
jax: 0.10.0
libtpu: 0.0.40
codegen_flags: <defaults>
</compile_context>

<pallas_src>
import functools
import math

import jax
import jax.numpy as jnp
from jax.experimental import pallas as pl
from jax.experimental.pallas import tpu as pltpu


def _round_up(x, m):
    return (x + m - 1) // m * m


# ----------------------------- kernel ---------------------------------------

def _ffn_kernel(x_ref, w1_ref, b1_ref, w2_ref, b2_ref, o_ref, *,
                f_chunk, n_chunks):
    """One row-tile of  y = relu(x @ W1 + b1) @ W2 + b2.

    x_ref : (tm, Dp) f32      W1 : (Dp, Fp) bf16    b1 : (1, Fp) f32
    o_ref : (tm, Dp) f32      W2 : (Fp, Dp) bf16    b2 : (1, Dp) f32
    """
    x = x_ref[...].astype(jnp.bfloat16)          # bf16 MXU operands
    acc = jnp.zeros(o_ref.shape, jnp.float32)    # f32 accumulator (may spill; ok)
    # Static slices are zero-cost ref views; n_chunks is a compile-time int,
    # so this unrolls into n_chunks fc1->relu->fc2-accumulate stages and the
    # (tm, Fp) intermediate never materializes.
    for c in range(n_chunks):
        c0 = c * f_chunk
        h = jnp.dot(x, w1_ref[:, c0:c0 + f_chunk],
                    preferred_element_type=jnp.float32)
        h = jnp.maximum(h + b1_ref[:, c0:c0 + f_chunk], 0.0)
        acc = acc + jnp.dot(h.astype(jnp.bfloat16),
                            w2_ref[c0:c0 + f_chunk, :],
                            preferred_element_type=jnp.float32)
    # TODO(synk): dropout is identity at inference; train-mode dropout would
    # use pltpu.prng_seed / pltpu.prng_random_bits here.
    o_ref[...] = acc + b2_ref[...]


# ----------------------------- wrappers --------------------------------------

def prepare_ffn_params(w1, b1, w2, b2):
    """Torch-layout f32 params -> padded, MXU-friendly kernel layout.

    torch layout : w1 (d_ff, d_model), b1 (d_ff,), w2 (d_model, d_ff), b2 (d_model,)
    kernel layout: W1 (Dp, Fp) bf16, b1 (1, Fp) f32, W2 (Fp, Dp) bf16, b2 (1, Dp) f32
    with Dp/Fp = d_model/d_ff rounded up to multiples of 128 (zero padding; exact).
    """
    d_ff, d_model = w1.shape
    Dp = _round_up(d_model, 128)
    Fp = _round_up(d_ff, 128)
    w1k = jnp.zeros((Dp, Fp), jnp.bfloat16).at[:d_model, :d_ff].set(
        w1.T.astype(jnp.bfloat16))
    b1k = jnp.zeros((1, Fp), jnp.float32).at[0, :d_ff].set(b1)
    w2k = jnp.zeros((Fp, Dp), jnp.bfloat16).at[:d_ff, :d_model].set(
        w2.T.astype(jnp.bfloat16))
    b2k = jnp.zeros((1, Dp), jnp.float32).at[0, :d_model].set(b2)
    return w1k, b1k, w2k, b2k


def pointwise_feedforward(x, kernel_params, *, d_model,
                          block_rows=512, f_chunk=512):
    """x: (..., d_model) f32 -> (..., d_model) f32 in a single pallas_call."""
    w1k, b1k, w2k, b2k = kernel_params
    Dp, Fp = w1k.shape

    lead = x.shape[:-1]
    xf = x.reshape(-1, d_model)            # fold batch/seq into one row axis
    M = xf.shape[0]

    # Column pad only when d_model isn't lane-aligned (exact no-op: padded x
    # columns hit zero W1 rows; padded output columns are sliced off below).
    if Dp != d_model:
        xf = jnp.pad(xf, ((0, 0), (0, Dp - d_model)))

    # Row tile: sublane aligned; guarantee >= 2 grid steps when M allows so
    # the "parallel" axis can actually shard across v7x's two TensorCores.
    tm = min(block_rows, _round_up(M, 8))
    if M > 8 and pl.cdiv(M, tm) < 2:
        tm = _round_up(pl.cdiv(_round_up(M, 8), 2), 8)
    n_row_tiles = pl.cdiv(M, tm)           # partial last tile handled by Pallas
    # NOTE: partial-tile correctness relies on rows being independent (OOB-
    # loaded rows only affect masked output rows).  Do not fuse cross-row ops
    # (e.g. layernorm) into this kernel without re-adding row padding.

    # d_ff chunk: a multiple of 128 that divides Fp, at most ~f_chunk wide.
    fc = math.gcd(Fp, max(128, _round_up(f_chunk, 128)))
    n_chunks = Fp // fc

    kernel = functools.partial(_ffn_kernel, f_chunk=fc, n_chunks=n_chunks)

    # VMEM budget: single-buffered resident weights/biases + double-buffered
    # x/out row tiles + accumulator & h-chunk scratch, with headroom; capped
    # at physical VMEM (v7x has only 64 MiB per TensorCore).
    weight_bytes = 2 * Dp * Fp * 2 + (Fp + Dp) * 4
    act_bytes = 2 * 2 * tm * Dp * 4
    scratch_bytes = tm * Dp * 4 + 2 * tm * fc * 4
    vmem_limit = max(32 << 20,
                     int(1.5 * (weight_bytes + act_bytes + scratch_bytes)))
    try:
        vmem_cap = pltpu.get_tpu_info().vmem_capacity_bytes - (8 << 20)
    except Exception:
        vmem_cap = 48 << 20                # conservative: fits every generation
    vmem_limit = int(min(vmem_limit, vmem_cap))

    cost = pl.CostEstimate(
        flops=4 * M * Dp * Fp,             # two matmuls, 2*M*K*N each
        transcendentals=0,
        bytes_accessed=xf.size * 4 + M * Dp * 4 + weight_bytes)

    def _run(single_buffer_weights):
        def _resident(shape):
            kwargs = {}
            if single_buffer_weights:
                # Constant block index across the grid => no re-DMA; single
                # buffering halves the resident weights' VMEM footprint.
                kwargs["pipeline_mode"] = pl.Buffered(1)
            return pl.BlockSpec(shape, lambda i, _n=len(shape): (0,) * _n,
                                **kwargs)

        return pl.pallas_call(
            kernel,
            out_shape=jax.ShapeDtypeStruct((M, Dp), jnp.float32),
            grid=(n_row_tiles,),
            in_specs=[pl.BlockSpec((tm, Dp), lambda i: (i, 0)),
                      _resident(w1k.shape), _resident(b1k.shape),
                      _resident(w2k.shape), _resident(b2k.shape)],
            out_specs=pl.BlockSpec((tm, Dp), lambda i: (i, 0)),
            compiler_params=pltpu.CompilerParams(
                dimension_semantics=("parallel",),
                vmem_limit_bytes=vmem_limit),
            cost_estimate=cost,
        )(xf, w1k, b1k, w2k, b2k)

    try:
        out = _run(True)
    except Exception:
        # pipeline_mode=pl.Buffered(1) not supported on this jax version:
        # fall back to default (double) buffering of the resident operands.
        out = _run(False)

    if Dp != d_model:
        out = out[:, :d_model]
    return out.reshape(*lead, d_model)


# --------------------------------- main ---------------------------------------

if __name__ == "__main__":
    B, S, d_model, d_ff = 2, 8, 32, 64
    key = jax.random.PRNGKey(0)
    kx, k1, k2, k3, k4 = jax.random.split(key, 5)

    x = jax.random.normal(kx, (B, S, d_model), jnp.float32)
    # torch nn.Linear layout: weight (out_features, in_features), bias (out_features,)
    w1 = jax.random.normal(k1, (d_ff, d_model), jnp.float32) * 0.1
    b1 = jax.random.normal(k2, (d_ff,), jnp.float32) * 0.1
    w2 = jax.random.normal(k3, (d_model, d_ff), jnp.float32) * 0.1
    b2 = jax.random.normal(k4, (d_model,), jnp.float32) * 0.1

    kparams = prepare_ffn_params(w1, b1, w2, b2)
    out = pointwise_feedforward(x, kparams, d_model=d_model)
    out = jax.block_until_ready(out)

    # pure-JAX f32 reference (dropout = identity at inference)
    ref = jnp.maximum(x @ w1.T + b1, 0.0) @ w2.T + b2

    assert out.shape == (B, S, d_model)
    max_err = float(jnp.max(jnp.abs(out - ref)))
    # bf16 MXU operands with f32 accumulation -> slightly loosened tolerance
    assert jnp.allclose(out, ref, rtol=2e-2, atol=2e-2), max_err

    print("KERNEL_OK")
</pallas_src>

<mosaic_0001>
module attributes {stable_mosaic.version = 11 : i64} {
  func.func @_ffn_kernel(%arg0: i32, %arg1: memref<8x128xf32, #tpu.memory_space<vmem>>, %arg2: memref<128x128xbf16, #tpu.memory_space<vmem>>, %arg3: memref<1x128xf32, #tpu.memory_space<vmem>>, %arg4: memref<128x128xbf16, #tpu.memory_space<vmem>>, %arg5: memref<1x128xf32, #tpu.memory_space<vmem>>, %arg6: memref<8x128xf32, #tpu.memory_space<vmem>>) attributes {dimension_semantics = [#tpu.dimension_semantics<parallel>], iteration_bounds = array<i64: 2>, scalar_prefetch = 0 : i64, scratch_operands = 0 : i64, tpu.core_type = #tpu.core_type<tc>, window_params = [{transform_indices = @transform_0, window_bounds = array<i64: 8, 128>}, {pipeline_mode = #tpu.pipeline_mode<synchronous>, transform_indices = @transform_1, window_bounds = array<i64: 128, 128>}, {pipeline_mode = #tpu.pipeline_mode<synchronous>, transform_indices = @transform_2, window_bounds = array<i64: 1, 128>}, {pipeline_mode = #tpu.pipeline_mode<synchronous>, transform_indices = @transform_3, window_bounds = array<i64: 128, 128>}, {pipeline_mode = #tpu.pipeline_mode<synchronous>, transform_indices = @transform_4, window_bounds = array<i64: 1, 128>}, {transform_indices = @transform_5, window_bounds = array<i64: 8, 128>}]} {
    %c0 = arith.constant 0 : index
    %c0_0 = arith.constant 0 : index
    %0 = vector.load %arg1[%c0, %c0_0] : memref<8x128xf32, #tpu.memory_space<vmem>>, vector<8x128xf32>
    %1 = arith.truncf %0 : vector<8x128xf32> to vector<8x128xbf16>
    %cst = arith.constant 0.000000e+00 : f32
    %2 = vector.broadcast %cst : f32 to vector<8x128xf32>
    %c0_1 = arith.constant 0 : index
    %c0_2 = arith.constant 0 : index
    %3 = vector.load %arg2[%c0_1, %c0_2] : memref<128x128xbf16, #tpu.memory_space<vmem>>, vector<128x128xbf16>
    %cst_3 = arith.constant dense<0.000000e+00> : vector<8x128xf32>
    %4 = tpu.matmul %1, %3, %cst_3 {dimension_numbers = #tpu.dot_dimension_numbers<[1], [0], [0], [1], [0, 0, 1, 1], [], []>} : vector<8x128xbf16>, vector<128x128xbf16>, vector<8x128xf32> -> vector<8x128xf32>
    %c0_4 = arith.constant 0 : index
    %c0_5 = arith.constant 0 : index
    %5 = vector.load %arg3[%c0_4, %c0_5] : memref<1x128xf32, #tpu.memory_space<vmem>>, vector<1x128xf32>
    %6 = vector.broadcast %5 : vector<1x128xf32> to vector<8x128xf32>
    %7 = arith.addf %4, %6 : vector<8x128xf32>
    %cst_6 = arith.constant 0.000000e+00 : f32
    %8 = vector.broadcast %cst_6 : f32 to vector<8x128xf32>
    %9 = arith.maximumf %7, %8 : vector<8x128xf32>
    %10 = arith.truncf %9 : vector<8x128xf32> to vector<8x128xbf16>
    %c0_7 = arith.constant 0 : index
    %c0_8 = arith.constant 0 : index
    %11 = vector.load %arg4[%c0_7, %c0_8] : memref<128x128xbf16, #tpu.memory_space<vmem>>, vector<128x128xbf16>
    %cst_9 = arith.constant dense<0.000000e+00> : vector<8x128xf32>
    %12 = tpu.matmul %10, %11, %cst_9 {dimension_numbers = #tpu.dot_dimension_numbers<[1], [0], [0], [1], [0, 0, 1, 1], [], []>} : vector<8x128xbf16>, vector<128x128xbf16>, vector<8x128xf32> -> vector<8x128xf32>
    %13 = arith.addf %2, %12 : vector<8x128xf32>
    %c0_10 = arith.constant 0 : index
    %c0_11 = arith.constant 0 : index
    %14 = vector.load %arg5[%c0_10, %c0_11] : memref<1x128xf32, #tpu.memory_space<vmem>>, vector<1x128xf32>
    %15 = vector.broadcast %14 : vector<1x128xf32> to vector<8x128xf32>
    %16 = arith.addf %13, %15 : vector<8x128xf32>
    %c0_12 = arith.constant 0 : index
    %c0_13 = arith.constant 0 : index
    %17 = vector.load %arg6[%c0_12, %c0_13] : memref<8x128xf32, #tpu.memory_space<vmem>>, vector<8x128xf32>
    tpu.vector_store %arg6[%c0_12, %c0_13], %16 {strides = array<i32>} : memref<8x128xf32, #tpu.memory_space<vmem>>, vector<8x128xf32>,
    return
  }
  func.func @transform_0(%arg0: i32) -> (i32, i32) {
    %c0_i32 = arith.constant 0 : i32
    %c0_i32_0 = arith.constant 0 : i32
    return %arg0, %c0_i32 : i32, i32
  }
  func.func @transform_1(%arg0: i32) -> (i32, i32) {
    %c0_i32 = arith.constant 0 : i32
    %c0_i32_0 = arith.constant 0 : i32
    %c0_i32_1 = arith.constant 0 : i32
    return %c0_i32, %c0_i32_0 : i32, i32
  }
  func.func @transform_2(%arg0: i32) -> (i32, i32) {
    %c0_i32 = arith.constant 0 : i32
    %c0_i32_0 = arith.constant 0 : i32
    %c0_i32_1 = arith.constant 0 : i32
    return %c0_i32, %c0_i32_0 : i32, i32
  }
  func.func @transform_3(%arg0: i32) -> (i32, i32) {
    %c0_i32 = arith.constant 0 : i32
    %c0_i32_0 = arith.constant 0 : i32
    %c0_i32_1 = arith.constant 0 : i32
    return %c0_i32, %c0_i32_0 : i32, i32
  }
  func.func @transform_4(%arg0: i32) -> (i32, i32) {
    %c0_i32 = arith.constant 0 : i32
    %c0_i32_0 = arith.constant 0 : i32
    %c0_i32_1 = arith.constant 0 : i32
    return %c0_i32, %c0_i32_0 : i32, i32
  }
  func.func @transform_5(%arg0: i32) -> (i32, i32) {
    %c0_i32 = arith.constant 0 : i32
    %c0_i32_0 = arith.constant 0 : i32
    return %arg0, %c0_i32 : i32, i32
  }
}

module attributes {stable_mosaic.version = 11 : i64} {
  func.func @_ffn_kernel(%arg0: i32, %arg1: memref<8x128xf32, #tpu.memory_space<vmem>>, %arg2: memref<128x128xbf16, #tpu.memory_space<vmem>>, %arg3: memref<1x128xf32, #tpu.memory_space<vmem>>, %arg4: memref<128x128xbf16, #tpu.memory_space<vmem>>, %arg5: memref<1x128xf32, #tpu.memory_space<vmem>>, %arg6: memref<8x128xf32, #tpu.memory_space<vmem>>) attributes {dimension_semantics = [#tpu.dimension_semantics<parallel>], iteration_bounds = array<i64: 2>, scalar_prefetch = 0 : i64, scratch_operands = 0 : i64, tpu.core_type = #tpu.core_type<tc>, window_params = [{transform_indices = @transform_0, window_bounds = array<i64: 8, 128>}, {pipeline_mode = #tpu.pipeline_mode<synchronous>, transform_indices = @transform_1, window_bounds = array<i64: 128, 128>}, {pipeline_mode = #tpu.pipeline_mode<synchronous>, transform_indices = @transform_2, window_bounds = array<i64: 1, 128>}, {pipeline_mode = #tpu.pipeline_mode<synchronous>, transform_indices = @transform_3, window_bounds = array<i64: 128, 128>}, {pipeline_mode = #tpu.pipeline_mode<synchronous>, transform_indices = @transform_4, window_bounds = array<i64: 1, 128>}, {transform_indices = @transform_5, window_bounds = array<i64: 8, 128>}]} {
    %c0 = arith.constant 0 : index
    %c0_0 = arith.constant 0 : index
    %0 = vector.load %arg1[%c0, %c0_0] : memref<8x128xf32, #tpu.memory_space<vmem>>, vector<8x128xf32>
    %1 = arith.truncf %0 : vector<8x128xf32> to vector<8x128xbf16>
    %cst = arith.constant 0.000000e+00 : f32
    %2 = vector.broadcast %cst : f32 to vector<8x128xf32>
    %c0_1 = arith.constant 0 : index
    %c0_2 = arith.constant 0 : index
    %3 = vector.load %arg2[%c0_1, %c0_2] : memref<128x128xbf16, #tpu.memory_space<vmem>>, vector<128x128xbf16>
    %cst_3 = arith.constant dense<0.000000e+00> : vector<8x128xf32>
    %4 = tpu.matmul %1, %3, %cst_3 {dimension_numbers = #tpu.dot_dimension_numbers<[1], [0], [0], [1], [0, 0, 1, 1], [], []>} : vector<8x128xbf16>, vector<128x128xbf16>, vector<8x128xf32> -> vector<8x128xf32>
    %c0_4 = arith.constant 0 : index
    %c0_5 = arith.constant 0 : index
    %5 = vector.load %arg3[%c0_4, %c0_5] : memref<1x128xf32, #tpu.memory_space<vmem>>, vector<1x128xf32>
    %6 = vector.broadcast %5 : vector<1x128xf32> to vector<8x128xf32>
    %7 = arith.addf %4, %6 : vector<8x128xf32>
    %cst_6 = arith.constant 0.000000e+00 : f32
    %8 = vector.broadcast %cst_6 : f32 to vector<8x128xf32>
    %9 = arith.maximumf %7, %8 : vector<8x128xf32>
    %10 = arith.truncf %9 : vector<8x128xf32> to vector<8x128xbf16>
    %c0_7 = arith.constant 0 : index
    %c0_8 = arith.constant 0 : index
    %11 = vector.load %arg4[%c0_7, %c0_8] : memref<128x128xbf16, #tpu.memory_space<vmem>>, vector<128x128xbf16>
    %cst_9 = arith.constant dense<0.000000e+00> : vector<8x128xf32>
    %12 = tpu.matmul %10, %11, %cst_9 {dimension_numbers = #tpu.dot_dimension_numbers<[1], [0], [0], [1], [0, 0, 1, 1], [], []>} : vector<8x128xbf16>, vector<128x128xbf16>, vector<8x128xf32> -> vector<8x128xf32>
    %13 = arith.addf %2, %12 : vector<8x128xf32>
    %c0_10 = arith.constant 0 : index
    %c0_11 = arith.constant 0 : index
    %14 = vector.load %arg5[%c0_10, %c0_11] : memref<1x128xf32, #tpu.memory_space<vmem>>, vector<1x128xf32>
    %15 = vector.broadcast %14 : vector<1x128xf32> to vector<8x128xf32>
    %16 = arith.addf %13, %15 : vector<8x128xf32>
    %c0_12 = arith.constant 0 : index
    %c0_13 = arith.constant 0 : index
    %17 = vector.load %arg6[%c0_12, %c0_13] : memref<8x128xf32, #tpu.memory_space<vmem>>, vector<8x128xf32>
    tpu.vector_store %arg6[%c0_12, %c0_13], %16 {strides = array<i32>} : memref<8x128xf32, #tpu.memory_space<vmem>>, vector<8x128xf32>,
    return
  }
  func.func @transform_0(%arg0: i32) -> (i32, i32) {
    %c0_i32 = arith.constant 0 : i32
    %c0_i32_0 = arith.constant 0 : i32
    return %arg0, %c0_i32 : i32, i32
  }
  func.func @transform_1(%arg0: i32) -> (i32, i32) {
    %c0_i32 = arith.constant 0 : i32
    %c0_i32_0 = arith.constant 0 : i32
    %c0_i32_1 = arith.constant 0 : i32
    return %c0_i32, %c0_i32_0 : i32, i32
  }
  func.func @transform_2(%arg0: i32) -> (i32, i32) {
    %c0_i32 = arith.constant 0 : i32
    %c0_i32_0 = arith.constant 0 : i32
    %c0_i32_1 = arith.constant 0 : i32
    return %c0_i32, %c0_i32_0 : i32, i32
  }
  func.func @transform_3(%arg0: i32) -> (i32, i32) {
    %c0_i32 = arith.constant 0 : i32
    %c0_i32_0 = arith.constant 0 : i32
    %c0_i32_1 = arith.constant 0 : i32
    return %c0_i32, %c0_i32_0 : i32, i32
  }
  func.func @transform_4(%arg0: i32) -> (i32, i32) {
    %c0_i32 = arith.constant 0 : i32
    %c0_i32_0 = arith.constant 0 : i32
    %c0_i32_1 = arith.constant 0 : i32
    return %c0_i32, %c0_i32_0 : i32, i32
  }
  func.func @transform_5(%arg0: i32) -> (i32, i32) {
    %c0_i32 = arith.constant 0 : i32
    %c0_i32_0 = arith.constant 0 : i32
    return %arg0, %c0_i32 : i32, i32
  }
}

</mosaic_0001>

<llo_original>
// kernel: tpu_custom_call.1
$region0: #{tpu_custom_call.1}
  #allocation0 [shape = 'u32[]', space=smem, size = 0x4, offset = 0x4, fixed_abs, tag = 'smem constant byte address 0x4 - core index']
  #allocation1 [shape = 'u32[72,128]{1,0:T(1,128)}', space=vmem, size = 0x9000, scoped, tag = 'internal scratch']
  %s0 = inlined_call_operand.hbm [shape: f32[16,128], index: 0, kind: input, shape index: {}]
  %s1 = inlined_call_operand.hbm [shape: bf16[128,128], index: 1, kind: input, shape index: {}]
  %s2 = inlined_call_operand.vmem [shape: f32[1,128], index: 2, kind: input, shape index: {}]
  %s3 = inlined_call_operand.hbm [shape: bf16[128,128], index: 3, kind: input, shape index: {}]
  %s4 = inlined_call_operand.vmem [shape: f32[1,128], index: 4, kind: input, shape index: {}]
  %s5 = inlined_call_operand.hbm [shape: f32[16,128], index: 5, kind: output, shape index: {}]
  %s6 = sld [smem:[#allocation0]]
  $region65: #{tpu_custom_call.1} parent=0
    _
  %s8 = ssub.s32 1, %s6
  %s9 = scalar_select 0, %s8, %s6
  $region1: #{tpu_custom_call.1} parent=0
    #allocation2 [shape = 'u8[8192]{0}', space=vmem, size = 0x2000, scoped, tag = 'input window, operand 0']
    #allocation3 [shape = 's32[2]{0}', space=sflag, size = 0x8, scoped, tag = 'scoped memory for tpu_custom_call.1']
    #allocation4 [shape = 's32[2]{0}', space=sflag, size = 0x8, scoped, tag = 'scoped memory for tpu_custom_call.1']
    #allocation5 [shape = 'u8[32768]{0}', space=vmem, size = 0x8000, scoped, tag = 'input window, operand 1, single buffered']
    #allocation6 [shape = 's32[1]{0}', space=sflag, size = 0x4, scoped, tag = 'scoped memory for tpu_custom_call.1']
    #allocation7 [shape = 'u8[32768]{0}', space=vmem, size = 0x8000, scoped, tag = 'input window, operand 3, single buffered']
    #allocation8 [shape = 'u8[8192]{0}', space=vmem, size = 0x2000, scoped, tag = 'output window, operand 0']
    %10 = vsyncpa [#allocation3], 0
    %s11 = scalar_lea.sflag [#allocation3], 1
    %12 = vsyncpa %s11, 0
    %13 = vsyncpa [#allocation6], 0
    %14 = vsyncpa [#allocation4], 0
    %s15 = scalar_lea.sflag [#allocation4], 1
    %16 = vsyncpa %s15, 0
    loop: start=0, step=1, limit=4
    $region2: #{tpu_custom_call.1} parent=1 // loop_pre_header
      _
    $region3: #{tpu_custom_call.1} parent=1 // loop_header
      %s18 = sphi 0, %s22
      %p19 = scmp.ge.s32.totalorder %s18, 4
      %s28 = sphi 0, %s30
      %s31 = sphi 0, %s28
      %s32 = sphi 0, %s31
      %s48 = sphi 0, %s32
      %s52 = sphi 0, %s52
      %s54 = sphi 0, %s52
      %s55 = sphi 0, %s54
      %s69 = sphi 0, %s55
      %s73 = sphi 0, %s73
      %s75 = sphi 0, %s73
      %s76 = sphi 0, %s75
      %s90 = sphi 0, %s76
      %s94 = sphi 0, %s94
      %s96 = sphi 0, %s94
      %s97 = sphi 0, %s96
      %s111 = sphi 0, %s97
      %s115 = sphi 0, %s115
      %s117 = sphi 0, %s115
      %s118 = sphi 0, %s117
      %s132 = sphi 0, %s118
      %s138 = sphi 0, %s140
      %s141 = sphi 0, %s138
      %s142 = sphi 0, %s141
      %s158 = sphi 0, %s142
    $region4: #{tpu_custom_call.1} parent=1 // loop_header_branch
      %21 = sbr.rel (%p19) target = $region8
    $region5: #{tpu_custom_call.1} parent=1 // loop_body
      %s23 = ssub.s32 %s18, 1
      %s24 = ssub.s32 %s18, 2
      %s25 = sadd.s32 %s18, 1
      %s26 = ssub.s32 %s18, %s25
      %p27 = scmp.eq.s32.totalorder %s26, 0
      %s29 = sadd.s32 %s28, 1
      %s30 = scalar_select %p27, %s28, %s29
      %p33 = pneg %p27
      %p34 = scmp.eq.s32.totalorder %s18, 1
      %p35 = por %p33, %p34
      %p36 = scmp.ne.s32.totalorder %s28, %s31
      %p37 = scmp.eq.s32.totalorder %s18, 0
      %p38 = por %p36, %p37
      %p39 = scmp.ne.s32.totalorder %s28, %s31
      %p40 = scmp.eq.s32.totalorder %s23, 1
      %p41 = por %p39, %p40
      %p42 = scmp.ne.s32.totalorder %s31, %s32
      %p43 = scmp.eq.s32.totalorder %s23, 0
      %p44 = por %p42, %p43
      %p45 = scmp.ne.s32.totalorder %s31, %s32
      %p46 = scmp.eq.s32.totalorder %s24, 1
      %p47 = por %p45, %p46
      %p49 = scmp.ne.s32.totalorder %s32, %s48
      %p50 = scmp.eq.s32.totalorder %s24, 0
      %p51 = por %p49, %p50
      %s53 = sadd.s32 %s52, 1
      %p56 = scmp.eq.s32.totalorder %s18, 1
      %p57 = scmp.ne.s32.totalorder %s52, %s54
      %p58 = scmp.eq.s32.totalorder %s18, 0
      %p59 = por %p57, %p58
      %p60 = scmp.ne.s32.totalorder %s52, %s54
      %p61 = scmp.eq.s32.totalorder %s23, 1
      %p62 = por %p60, %p61
      %p63 = scmp.ne.s32.totalorder %s54, %s55
      %p64 = scmp.eq.s32.totalorder %s23, 0
      %p65 = por %p63, %p64
      %p66 = scmp.ne.s32.totalorder %s54, %s55
      %p67 = scmp.eq.s32.totalorder %s24, 1
      %p68 = por %p66, %p67
      %p70 = scmp.ne.s32.totalorder %s55, %s69
      %p71 = scmp.eq.s32.totalorder %s24, 0
      %p72 = por %p70, %p71
      %s74 = sadd.s32 %s73, 1
      %p77 = scmp.eq.s32.totalorder %s18, 1
      %p78 = scmp.ne.s32.totalorder %s73, %s75
      %p79 = scmp.eq.s32.totalorder %s18, 0
      %p80 = por %p78, %p79
      %p81 = scmp.ne.s32.totalorder %s73, %s75
      %p82 = scmp.eq.s32.totalorder %s23, 1
      %p83 = por %p81, %p82
      %p84 = scmp.ne.s32.totalorder %s75, %s76
      %p85 = scmp.eq.s32.totalorder %s23, 0
      %p86 = por %p84, %p85
      %p87 = scmp.ne.s32.totalorder %s75, %s76
      %p88 = scmp.eq.s32.totalorder %s24, 1
      %p89 = por %p87, %p88
      %p91 = scmp.ne.s32.totalorder %s76, %s90
      %p92 = scmp.eq.s32.totalorder %s24, 0
      %p93 = por %p91, %p92
      %s95 = sadd.s32 %s94, 1
      %p98 = scmp.eq.s32.totalorder %s18, 1
      %p99 = scmp.ne.s32.totalorder %s94, %s96
      %p100 = scmp.eq.s32.totalorder %s18, 0
      %p101 = por %p99, %p100
      %p102 = scmp.ne.s32.totalorder %s94, %s96
      %p103 = scmp.eq.s32.totalorder %s23, 1
      %p104 = por %p102, %p103
      %p105 = scmp.ne.s32.totalorder %s96, %s97
      %p106 = scmp.eq.s32.totalorder %s23, 0
      %p107 = por %p105, %p106
      %p108 = scmp.ne.s32.totalorder %s96, %s97
      %p109 = scmp.eq.s32.totalorder %s24, 1
      %p110 = por %p108, %p109
      %p112 = scmp.ne.s32.totalorder %s97, %s111
      %p113 = scmp.eq.s32.totalorder %s24, 0
      %p114 = por %p112, %p113
      %s116 = sadd.s32 %s115, 1
      %p119 = scmp.eq.s32.totalorder %s18, 1
      %p120 = scmp.ne.s32.totalorder %s115, %s117
      %p121 = scmp.eq.s32.totalorder %s18, 0
      %p122 = por %p120, %p121
      %p123 = scmp.ne.s32.totalorder %s115, %s117
      %p124 = scmp.eq.s32.totalorder %s23, 1
      %p125 = por %p123, %p124
      %p126 = scmp.ne.s32.totalorder %s117, %s118
      %p127 = scmp.eq.s32.totalorder %s23, 0
      %p128 = por %p126, %p127
      %p129 = scmp.ne.s32.totalorder %s117, %s118
      %p130 = scmp.eq.s32.totalorder %s24, 1
      %p131 = por %p129, %p130
      %p133 = scmp.ne.s32.totalorder %s118, %s132
      %p134 = scmp.eq.s32.totalorder %s24, 0
      %p135 = por %p133, %p134
      %s136 = ssub.s32 %s18, %s25
      %p137 = scmp.eq.s32.totalorder %s136, 0
      %s139 = sadd.s32 %s138, 1
      %s140 = scalar_select %p137, %s138, %s139
      %p143 = pneg %p137
      %p144 = scmp.eq.s32.totalorder %s18, 1
      %p145 = por %p143, %p144
      %p146 = scmp.ne.s32.totalorder %s138, %s141
      %p147 = scmp.eq.s32.totalorder %s18, 0
      %p148 = por %p146, %p147
      %p149 = scmp.ne.s32.totalorder %s138, %s141
      %p150 = scmp.eq.s32.totalorder %s23, 1
      %p151 = por %p149, %p150
      %p152 = scmp.ne.s32.totalorder %s141, %s142
      %p153 = scmp.eq.s32.totalorder %s23, 0
      %p154 = por %p152, %p153
      %p155 = scmp.ne.s32.totalorder %s141, %s142
      %p156 = scmp.eq.s32.totalorder %s24, 1
      %p157 = por %p155, %p156
      %p159 = scmp.ne.s32.totalorder %s142, %s158
      %p160 = scmp.eq.s32.totalorder %s24, 0
      %p161 = por %p159, %p160
      %p162 = scmp.le.s32.totalorder 1, %s18
      %p163 = scmp.lt.s32.totalorder %s18, 3
      %p164 = pnand %p162, %p163
      %p165 = pneg %p164
      // Predicated region
      $region9: #{tpu_custom_call.1} parent=5 // pred_check
        _
      $region10: #{tpu_custom_call.1} parent=5 // pred_check_branch
        %167 = sbr.rel (%p164) target = $region12
      $region11: #{tpu_custom_call.1} parent=5 // pred_region
        %s168 = ssub.s32 %s18, 1
        // Predicated region
        $region13: #{tpu_custom_call.1} parent=11 // pred_check
          %p169 = pneg %p65
        $region14: #{tpu_custom_call.1} parent=11 // pred_check_branch
          %171 = sbr.rel (%p169) target = $region16
        $region15: #{tpu_custom_call.1} parent=11 // pred_region
          %173 = vsyncadd [#allocation6], 0
          %s174 = sshll.u32 %s1, 4
          %s175 = int_to_ptr.hbm [resolvable:$true] %s174
          %s176 = sshll.u32 [#allocation5], 4
          %s177 = int_to_ptr.vmem [resolvable:$true] %s176
          %182 = dma.hbm_to_vmem [thread:$0]  %s175, 1024, %s177, [#allocation6], 64, 64, 4
        $region16: #{tpu_custom_call.1} parent=11 // pred_fallthru
          _
        // Predicated region
        $region17: #{tpu_custom_call.1} parent=11 // pred_check
          %p183 = pneg %p86
        $region18: #{tpu_custom_call.1} parent=11 // pred_check_branch
          %185 = sbr.rel (%p183) target = $region20
        $region19: #{tpu_custom_call.1} parent=11 // pred_region
          _
        $region20: #{tpu_custom_call.1} parent=11 // pred_fallthru
          _
        // Predicated region
        $region21: #{tpu_custom_call.1} parent=11 // pred_check
          %p186 = pneg %p107
        $region22: #{tpu_custom_call.1} parent=11 // pred_check_branch
          %188 = sbr.rel (%p186) target = $region24
        $region23: #{tpu_custom_call.1} parent=11 // pred_region
          %190 = vsyncadd [#allocation6], 0
          %s191 = sshll.u32 %s3, 4
          %s192 = int_to_ptr.hbm [resolvable:$true] %s191
          %s193 = sshll.u32 [#allocation7], 4
          %s194 = int_to_ptr.vmem [resolvable:$true] %s193
          %199 = dma.hbm_to_vmem [thread:$0]  %s192, 1024, %s194, [#allocation6], 64, 64, 4
        $region24: #{tpu_custom_call.1} parent=11 // pred_fallthru
          _
        // Predicated region
        $region25: #{tpu_custom_call.1} parent=11 // pred_check
          %p200 = pneg %p128
        $region26: #{tpu_custom_call.1} parent=11 // pred_check_branch
          %202 = sbr.rel (%p200) target = $region28
        $region27: #{tpu_custom_call.1} parent=11 // pred_region
          _
        $region28: #{tpu_custom_call.1} parent=11 // pred_fallthru
          _
      $region12: #{tpu_custom_call.1} parent=5 // pred_fallthru
        _
      %p203 = scmp.lt.s32.totalorder %s18, 2
      // Predicated region
      $region29: #{tpu_custom_call.1} parent=5 // pred_check
        %p204 = pneg %p203
      $region30: #{tpu_custom_call.1} parent=5 // pred_check_branch
        %206 = sbr.rel (%p204) target = $region32
      $region31: #{tpu_custom_call.1} parent=5 // pred_region
        // Predicated region
        $region33: #{tpu_custom_call.1} parent=31 // pred_check
          %p207 = pneg %p38
        $region34: #{tpu_custom_call.1} parent=31 // pred_check_branch
          %209 = sbr.rel (%p207) target = $region36
        $region35: #{tpu_custom_call.1} parent=31 // pred_region
          %s210 = sand.u32 %s28, 1
          %s211 = scalar_lea.sflag [#allocation3], %s210
          %s212 = sand.u32 %s28, 1
          %s213 = smul.addr %s212, 8
          %s214 = scalar_lea.vmem [#allocation2], %s213
          %216 = vsyncadd %s211, 0
          %s217 = smul.addr %s18, 8
          %s218 = scalar_lea.hbm %s0, %s217
          %s220 = sshll.u32 %s218, 4
          %s221 = int_to_ptr.hbm [resolvable:$true] %s220
          %s222 = sshll.u32 %s214, 4
          %s223 = int_to_ptr.vmem [resolvable:$true] %s222
          %225 = dma.hbm_to_vmem [thread:$0]  %s221, 128, %s223, %s211
        $region36: #{tpu_custom_call.1} parent=31 // pred_fallthru
          _
      $region32: #{tpu_custom_call.1} parent=5 // pred_fallthru
        _
      %p226 = scmp.le.s32.totalorder 1, %s18
      %p227 = scmp.lt.s32.totalorder %s18, 3
      %p228 = pnand %p226, %p227
      %p229 = pneg %p228
      // Predicated region
      $region37: #{tpu_custom_call.1} parent=5 // pred_check
        _
      $region38: #{tpu_custom_call.1} parent=5 // pred_check_branch
        %231 = sbr.rel (%p228) target = $region40
      $region39: #{tpu_custom_call.1} parent=5 // pred_region
        %s232 = ssub.s32 %s18, 1
        %s233 = sand.u32 %s31, 1
        %s234 = scalar_lea.sflag [#allocation3], %s233
        %s235 = sand.u32 %s31, 1
        %s236 = smul.addr %s235, 8
        %s237 = scalar_lea.vmem [#allocation2], %s236
        // Predicated region
        $region41: #{tpu_custom_call.1} parent=39 // pred_check
          %p238 = pneg %p44
        $region42: #{tpu_custom_call.1} parent=39 // pred_check_branch
          %240 = sbr.rel (%p238) target = $region44
        $region43: #{tpu_custom_call.1} parent=39 // pred_region
          %242 = dma.done %s234, 128
        $region44: #{tpu_custom_call.1} parent=39 // pred_fallthru
          _
        // Predicated region
        $region45: #{tpu_custom_call.1} parent=39 // pred_check
          %p243 = pneg %p65
        $region46: #{tpu_custom_call.1} parent=39 // pred_check_branch
          %245 = sbr.rel (%p243) target = $region48
        $region47: #{tpu_custom_call.1} parent=39 // pred_region
          %247 = dma.done [#allocation6], 1024
        $region48: #{tpu_custom_call.1} parent=39 // pred_fallthru
          _
        // Predicated region
        $region49: #{tpu_custom_call.1} parent=39 // pred_check
          %p248 = pneg %p107
        $region50: #{tpu_custom_call.1} parent=39 // pred_check_branch
          %250 = sbr.rel (%p248) target = $region52
        $region51: #{tpu_custom_call.1} parent=39 // pred_region
          %252 = dma.done [#allocation6], 1024
        $region52: #{tpu_custom_call.1} parent=39 // pred_fallthru
          _
        %s253 = sand.u32 %s31, 1
        %s254 = scalar_lea.sflag [#allocation3], %s253
        %s255 = sand.u32 %s31, 1
        %s256 = smul.addr %s255, 8
        %s257 = scalar_lea.vmem [#allocation2], %s256
        %p258 = pneg %p44
        %p259 = pneg %p41
        %p260 = pneg %p65
        %p261 = pneg %p62
        %p262 = pneg %p86
        %p263 = pneg %p83
        %p264 = pneg %p107
        %p265 = pneg %p104
        %p266 = pneg %p128
        %p267 = pneg %p125
        %p268 = pneg %p154
        %p269 = pneg %p151
        %s270 = sand.u32 %s141, 1
        %s271 = scalar_lea.sflag [#allocation4], %s270
        %s272 = sand.u32 %s141, 1
        %s273 = smul.addr %s272, 8
        %s274 = scalar_lea.vmem [#allocation8], %s273
        %v275 = vld [vmem:[%s237] sm:$0xff]
        %v276 = vpack.c.bf16 %v275, %v275
        %v277 = vld [vmem:[#allocation5] sm:$0xf]
        %v278 = vld [vmem:[#allocation5 + $0x4] sm:$0xf]
        %v279 = vld [vmem:[#allocation5 + $0x8] sm:$0xf]
        %v280 = vld [vmem:[#allocation5 + $0xc] sm:$0xf]
        %v281 = vld [vmem:[#allocation5 + $0x10] sm:$0xf]
        %v282 = vld [vmem:[#allocation5 + $0x14] sm:$0xf]
        %v283 = vld [vmem:[#allocation5 + $0x18] sm:$0xf]
        %v284 = vld [vmem:[#allocation5 + $0x1c] sm:$0xf]
        %v285 = vld [vmem:[#allocation5 + $0x20] sm:$0xf]
        %v286 = vld [vmem:[#allocation5 + $0x24] sm:$0xf]
        %v287 = vld [vmem:[#allocation5 + $0x28] sm:$0xf]
        %v288 = vld [vmem:[#allocation5 + $0x2c] sm:$0xf]
        %v289 = vld [vmem:[#allocation5 + $0x30] sm:$0xf]
        %v290 = vld [vmem:[#allocation5 + $0x34] sm:$0xf]
        %v291 = vld [vmem:[#allocation5 + $0x38] sm:$0xf]
        %v292 = vld [vmem:[#allocation5 + $0x3c] sm:$0xf]
        %v293 = vld [vmem:[%s2] sm:$0x1]
        %v295 = vperm.slane %v293, 0
        %v313 = vunpack.c.l.b16 %v277
        %v314 = vunpack.c.l.b16 %v278
        %v315 = vunpack.c.l.b16 %v279
        %v316 = vunpack.c.l.b16 %v280
        %v317 = vunpack.c.l.b16 %v281
        %v318 = vunpack.c.l.b16 %v282
        %v319 = vunpack.c.l.b16 %v283
        %v320 = vunpack.c.l.b16 %v284
        %v321 = vunpack.c.l.b16 %v285
        %v322 = vunpack.c.l.b16 %v286
        %v323 = vunpack.c.l.b16 %v287
        %v324 = vunpack.c.l.b16 %v288
        %v325 = vunpack.c.l.b16 %v289
        %v326 = vunpack.c.l.b16 %v290
        %v327 = vunpack.c.l.b16 %v291
        %v328 = vunpack.c.l.b16 %v292
        %v329 = vpack.c.b16 %v314, %v313
        %v330 = vpack.c.b16 %v316, %v315
        %v331 = vpack.c.b16 %v318, %v317
        %v332 = vpack.c.b16 %v320, %v319
        %v333 = vpack.c.b16 %v322, %v321
        %v334 = vpack.c.b16 %v324, %v323
        %v335 = vpack.c.b16 %v326, %v325
        %v336 = vpack.c.b16 %v328, %v327
        %345 = vmatpush.bf16.msra.mxu0 %v336
        %346 = vmatpush.bf16.msra.mxu0 %v335
        %347 = vmatpush.bf16.msra.mxu0 %v334
        %348 = vmatpush.bf16.msra.mxu0 %v333
        %349 = vmatpush.bf16.msra.mxu0 %v332
        %350 = vmatpush.bf16.msra.mxu0 %v331
        %351 = vmatpush.bf16.msra.mxu0 %v330
        %352 = vmatpush.bf16.msra.mxu0 %v329
        %353 = vmatmul.bf16.gmra.mxu0 %v276
        %v354 = vpop.f32.mrf.mxu0
        %v355 = vadd.f32 %v295, %v354
        %v356 = vpop.f32.mrf.mxu0
        %357 = vdwg.mxu0
        %v358 = vmax.f32 %v355, 0.0
        %v359 = vpack.c.bf16 %v358, %v358
        %v360 = vld [vmem:[#allocation7] sm:$0xf]
        %v361 = vld [vmem:[#allocation7 + $0x4] sm:$0xf]
        %v362 = vld [vmem:[#allocation7 + $0x8] sm:$0xf]
        %v363 = vld [vmem:[#allocation7 + $0xc] sm:$0xf]
        %v364 = vld [vmem:[#allocation7 + $0x10] sm:$0xf]
        %v365 = vld [vmem:[#allocation7 + $0x14] sm:$0xf]
        %v366 = vld [vmem:[#allocation7 + $0x18] sm:$0xf]
        %v367 = vld [vmem:[#allocation7 + $0x1c] sm:$0xf]
        %v368 = vld [vmem:[#allocation7 + $0x20] sm:$0xf]
        %v369 = vld [vmem:[#allocation7 + $0x24] sm:$0xf]
        %v370 = vld [vmem:[#allocation7 + $0x28] sm:$0xf]
        %v371 = vld [vmem:[#allocation7 + $0x2c] sm:$0xf]
        %v372 = vld [vmem:[#allocation7 + $0x30] sm:$0xf]
        %v373 = vld [vmem:[#allocation7 + $0x34] sm:$0xf]
        %v374 = vld [vmem:[#allocation7 + $0x38] sm:$0xf]
        %v375 = vld [vmem:[#allocation7 + $0x3c] sm:$0xf]
        %v376 = vld [vmem:[%s4] sm:$0x1]
        %v378 = vperm.slane %v376, 0
        %v396 = vunpack.c.l.b16 %v360
        %v397 = vunpack.c.l.b16 %v361
        %v398 = vunpack.c.l.b16 %v362
        %v399 = vunpack.c.l.b16 %v363
        %v400 = vunpack.c.l.b16 %v364
        %v401 = vunpack.c.l.b16 %v365
        %v402 = vunpack.c.l.b16 %v366
        %v403 = vunpack.c.l.b16 %v367
        %v404 = vunpack.c.l.b16 %v368
        %v405 = vunpack.c.l.b16 %v369
        %v406 = vunpack.c.l.b16 %v370
        %v407 = vunpack.c.l.b16 %v371
        %v408 = vunpack.c.l.b16 %v372
        %v409 = vunpack.c.l.b16 %v373
        %v410 = vunpack.c.l.b16 %v374
        %v411 = vunpack.c.l.b16 %v375
        %v412 = vpack.c.b16 %v397, %v396
        %v413 = vpack.c.b16 %v399, %v398
        %v414 = vpack.c.b16 %v401, %v400
        %v415 = vpack.c.b16 %v403, %v402
        %v416 = vpack.c.b16 %v405, %v404
        %v417 = vpack.c.b16 %v407, %v406
        %v418 = vpack.c.b16 %v409, %v408
        %v419 = vpack.c.b16 %v411, %v410
        %428 = vmatpush.bf16.msra.mxu0 %v419
        %429 = vmatpush.bf16.msra.mxu0 %v418
        %430 = vmatpush.bf16.msra.mxu0 %v417
        %431 = vmatpush.bf16.msra.mxu0 %v416
        %432 = vmatpush.bf16.msra.mxu0 %v415
        %433 = vmatpush.bf16.msra.mxu0 %v414
        %434 = vmatpush.bf16.msra.mxu0 %v413
        %435 = vmatpush.bf16.msra.mxu0 %v412
        %436 = vmatmul.bf16.gmra.mxu0 %v359
        %v437 = vpop.f32.mrf.mxu0
        %v438 = vadd.f32 %v378, %v437
        %v439 = vpop.f32.mrf.mxu0
        %440 = vdwg.mxu0
        %441 = vst [vmem:[%s274] sm:$0xff] %v438
        %s442 = sand.u32 %s141, 1
        %s443 = scalar_lea.sflag [#allocation4], %s442
        %s444 = sand.u32 %s141, 1
        %s445 = smul.addr %s444, 8
        %s446 = scalar_lea.vmem [#allocation8], %s445
        // Predicated region
        $region53: #{tpu_custom_call.1} parent=39 // pred_check
          %p447 = pneg %p151
        $region54: #{tpu_custom_call.1} parent=39 // pred_check_branch
          %449 = sbr.rel (%p447) target = $region56
        $region55: #{tpu_custom_call.1} parent=39 // pred_region
          %451 = vsyncadd %s443, 0
          %s452 = smul.addr %s23, 8
          %s453 = scalar_lea.hbm %s5, %s452
          %s455 = sshll.u32 %s446, 4
          %s456 = int_to_ptr.vmem [resolvable:$true] %s455
          %s457 = sshll.u32 %s453, 4
          %s458 = int_to_ptr.hbm [resolvable:$true] %s457
          %460 = dma.vmem_to_hbm [thread:$0]  %s456, 128, %s458, %s443
        $region56: #{tpu_custom_call.1} parent=39 // pred_fallthru
          _
      $region40: #{tpu_custom_call.1} parent=5 // pred_fallthru
        _
      %p461 = scmp.le.s32.totalorder 2, %s18
      // Predicated region
      $region57: #{tpu_custom_call.1} parent=5 // pred_check
        %p462 = pneg %p461
      $region58: #{tpu_custom_call.1} parent=5 // pred_check_branch
        %464 = sbr.rel (%p462) target = $region60
      $region59: #{tpu_custom_call.1} parent=5 // pred_region
        %s465 = ssub.s32 %s18, 2
        // Predicated region
        $region61: #{tpu_custom_call.1} parent=59 // pred_check
          %p466 = pneg %p157
        $region62: #{tpu_custom_call.1} parent=59 // pred_check_branch
          %468 = sbr.rel (%p466) target = $region64
        $region63: #{tpu_custom_call.1} parent=59 // pred_region
          %s469 = sand.u32 %s142, 1
          %s470 = scalar_lea.sflag [#allocation4], %s469
          %s471 = sand.u32 %s142, 1
          %s472 = smul.addr %s471, 8
          %s473 = scalar_lea.vmem [#allocation8], %s472
          %475 = dma.done %s470, 128
        $region64: #{tpu_custom_call.1} parent=59 // pred_fallthru
          _
      $region60: #{tpu_custom_call.1} parent=5 // pred_fallthru
        _
    $region6: #{tpu_custom_call.1} parent=1 // loop_footer
      %s22 = sadd.s32 1, %s18
    $region7: #{tpu_custom_call.1} parent=1 // loop_footer_branch
      %17 = sbr.rel target = $region3
    $region8: #{tpu_custom_call.1} parent=1 // loop_exit
      _
    %476 = vsyncpa [#allocation3], 1
    %s477 = scalar_lea.sflag [#allocation3], 1
    %478 = vsyncpa %s477, 1
    %479 = vsyncpa [#allocation6], 1
    %480 = vsyncpa [#allocation4], 1
    %s481 = scalar_lea.sflag [#allocation4], 1
    %482 = vsyncpa %s481, 1

// kernel: tpu_custom_call.1
$region0: #{tpu_custom_call.1}
  #allocation0 [shape = 'u32[]', space=smem, size = 0x4, offset = 0x4, fixed_abs, tag = 'smem constant byte address 0x4 - core index']
  #allocation1 [shape = 'u32[72,128]{1,0:T(1,128)}', space=vmem, size = 0x9000, scoped, tag = 'internal scratch']
  %s0 = inlined_call_operand.hbm [shape: f32[16,128], index: 0, kind: input, shape index: {}]
  %s1 = inlined_call_operand.hbm [shape: bf16[128,128], index: 1, kind: input, shape index: {}]
  %s2 = inlined_call_operand.vmem [shape: f32[1,128], index: 2, kind: input, shape index: {}]
  %s3 = inlined_call_operand.hbm [shape: bf16[128,128], index: 3, kind: input, shape index: {}]
  %s4 = inlined_call_operand.vmem [shape: f32[1,128], index: 4, kind: input, shape index: {}]
  %s5 = inlined_call_operand.hbm [shape: f32[16,128], index: 5, kind: output, shape index: {}]
  %s6 = sld [smem:[#allocation0]]
  $region65: #{tpu_custom_call.1} parent=0
    _
  %s8 = ssub.s32 1, %s6
  %s9 = scalar_select 0, %s8, %s6
  $region1: #{tpu_custom_call.1} parent=0
    #allocation2 [shape = 'u8[8192]{0}', space=vmem, size = 0x2000, scoped, tag = 'input window, operand 0']
    #allocation3 [shape = 's32[2]{0}', space=sflag, size = 0x8, scoped, tag = 'scoped memory for tpu_custom_call.1']
    #allocation4 [shape = 's32[2]{0}', space=sflag, size = 0x8, scoped, tag = 'scoped memory for tpu_custom_call.1']
    #allocation5 [shape = 'u8[32768]{0}', space=vmem, size = 0x8000, scoped, tag = 'input window, operand 1, single buffered']
    #allocation6 [shape = 's32[1]{0}', space=sflag, size = 0x4, scoped, tag = 'scoped memory for tpu_custom_call.1']
    #allocation7 [shape = 'u8[32768]{0}', space=vmem, size = 0x8000, scoped, tag = 'input window, operand 3, single buffered']
    #allocation8 [shape = 'u8[8192]{0}', space=vmem, size = 0x2000, scoped, tag = 'output window, operand 0']
    %10 = vsyncpa [#allocation3], 0
    %s11 = scalar_lea.sflag [#allocation3], 1
    %12 = vsyncpa %s11, 0
    %13 = vsyncpa [#allocation6], 0
    %14 = vsyncpa [#allocation4], 0
    %s15 = scalar_lea.sflag [#allocation4], 1
    %16 = vsyncpa %s15, 0
    loop: start=0, step=1, limit=4
    $region2: #{tpu_custom_call.1} parent=1 // loop_pre_header
      _
    $region3: #{tpu_custom_call.1} parent=1 // loop_header
      %s18 = sphi 0, %s22
      %p19 = scmp.ge.s32.totalorder %s18, 4
      %s28 = sphi 0, %s30
      %s31 = sphi 0, %s28
      %s32 = sphi 0, %s31
      %s48 = sphi 0, %s32
      %s52 = sphi 0, %s52
      %s54 = sphi 0, %s52
      %s55 = sphi 0, %s54
      %s69 = sphi 0, %s55
      %s73 = sphi 0, %s73
      %s75 = sphi 0, %s73
      %s76 = sphi 0, %s75
      %s90 = sphi 0, %s76
      %s94 = sphi 0, %s94
      %s96 = sphi 0, %s94
      %s97 = sphi 0, %s96
      %s111 = sphi 0, %s97
      %s115 = sphi 0, %s115
      %s117 = sphi 0, %s115
      %s118 = sphi 0, %s117
      %s132 = sphi 0, %s118
      %s138 = sphi 0, %s140
      %s141 = sphi 0, %s138
      %s142 = sphi 0, %s141
      %s158 = sphi 0, %s142
    $region4: #{tpu_custom_call.1} parent=1 // loop_header_branch
      %21 = sbr.rel (%p19) target = $region8
    $region5: #{tpu_custom_call.1} parent=1 // loop_body
      %s23 = ssub.s32 %s18, 1
      %s24 = ssub.s32 %s18, 2
      %s25 = sadd.s32 %s18, 1
      %s26 = ssub.s32 %s18, %s25
      %p27 = scmp.eq.s32.totalorder %s26, 0
      %s29 = sadd.s32 %s28, 1
      %s30 = scalar_select %p27, %s28, %s29
      %p33 = pneg %p27
      %p34 = scmp.eq.s32.totalorder %s18, 1
      %p35 = por %p33, %p34
      %p36 = scmp.ne.s32.totalorder %s28, %s31
      %p37 = scmp.eq.s32.totalorder %s18, 0
      %p38 = por %p36, %p37
      %p39 = scmp.ne.s32.totalorder %s28, %s31
      %p40 = scmp.eq.s32.totalorder %s23, 1
      %p41 = por %p39, %p40
      %p42 = scmp.ne.s32.totalorder %s31, %s32
      %p43 = scmp.eq.s32.totalorder %s23, 0
      %p44 = por %p42, %p43
      %p45 = scmp.ne.s32.totalorder %s31, %s32
      %p46 = scmp.eq.s32.totalorder %s24, 1
      %p47 = por %p45, %p46
      %p49 = scmp.ne.s32.totalorder %s32, %s48
      %p50 = scmp.eq.s32.totalorder %s24, 0
      %p51 = por %p49, %p50
      %s53 = sadd.s32 %s52, 1
      %p56 = scmp.eq.s32.totalorder %s18, 1
      %p57 = scmp.ne.s32.totalorder %s52, %s54
      %p58 = scmp.eq.s32.totalorder %s18, 0
      %p59 = por %p57, %p58
      %p60 = scmp.ne.s32.totalorder %s52, %s54
      %p61 = scmp.eq.s32.totalorder %s23, 1
      %p62 = por %p60, %p61
      %p63 = scmp.ne.s32.totalorder %s54, %s55
      %p64 = scmp.eq.s32.totalorder %s23, 0
      %p65 = por %p63, %p64
      %p66 = scmp.ne.s32.totalorder %s54, %s55
      %p67 = scmp.eq.s32.totalorder %s24, 1
      %p68 = por %p66, %p67
      %p70 = scmp.ne.s32.totalorder %s55, %s69
      %p71 = scmp.eq.s32.totalorder %s24, 0
      %p72 = por %p70, %p71
      %s74 = sadd.s32 %s73, 1
      %p77 = scmp.eq.s32.totalorder %s18, 1
      %p78 = scmp.ne.s32.totalorder %s73, %s75
      %p79 = scmp.eq.s32.totalorder %s18, 0
      %p80 = por %p78, %p79
      %p81 = scmp.ne.s32.totalorder %s73, %s75
      %p82 = scmp.eq.s32.totalorder %s23, 1
      %p83 = por %p81, %p82
      %p84 = scmp.ne.s32.totalorder %s75, %s76
      %p85 = scmp.eq.s32.totalorder %s23, 0
      %p86 = por %p84, %p85
      %p87 = scmp.ne.s32.totalorder %s75, %s76
      %p88 = scmp.eq.s32.totalorder %s24, 1
      %p89 = por %p87, %p88
      %p91 = scmp.ne.s32.totalorder %s76, %s90
      %p92 = scmp.eq.s32.totalorder %s24, 0
      %p93 = por %p91, %p92
      %s95 = sadd.s32 %s94, 1
      %p98 = scmp.eq.s32.totalorder %s18, 1
      %p99 = scmp.ne.s32.totalorder %s94, %s96
      %p100 = scmp.eq.s32.totalorder %s18, 0
      %p101 = por %p99, %p100
      %p102 = scmp.ne.s32.totalorder %s94, %s96
      %p103 = scmp.eq.s32.totalorder %s23, 1
      %p104 = por %p102, %p103
      %p105 = scmp.ne.s32.totalorder %s96, %s97
      %p106 = scmp.eq.s32.totalorder %s23, 0
      %p107 = por %p105, %p106
      %p108 = scmp.ne.s32.totalorder %s96, %s97
      %p109 = scmp.eq.s32.totalorder %s24, 1
      %p110 = por %p108, %p109
      %p112 = scmp.ne.s32.totalorder %s97, %s111
      %p113 = scmp.eq.s32.totalorder %s24, 0
      %p114 = por %p112, %p113
      %s116 = sadd.s32 %s115, 1
      %p119 = scmp.eq.s32.totalorder %s18, 1
      %p120 = scmp.ne.s32.totalorder %s115, %s117
      %p121 = scmp.eq.s32.totalorder %s18, 0
      %p122 = por %p120, %p121
      %p123 = scmp.ne.s32.totalorder %s115, %s117
      %p124 = scmp.eq.s32.totalorder %s23, 1
      %p125 = por %p123, %p124
      %p126 = scmp.ne.s32.totalorder %s117, %s118
      %p127 = scmp.eq.s32.totalorder %s23, 0
      %p128 = por %p126, %p127
      %p129 = scmp.ne.s32.totalorder %s117, %s118
      %p130 = scmp.eq.s32.totalorder %s24, 1
      %p131 = por %p129, %p130
      %p133 = scmp.ne.s32.totalorder %s118, %s132
      %p134 = scmp.eq.s32.totalorder %s24, 0
      %p135 = por %p133, %p134
      %s136 = ssub.s32 %s18, %s25
      %p137 = scmp.eq.s32.totalorder %s136, 0
      %s139 = sadd.s32 %s138, 1
      %s140 = scalar_select %p137, %s138, %s139
      %p143 = pneg %p137
      %p144 = scmp.eq.s32.totalorder %s18, 1
      %p145 = por %p143, %p144
      %p146 = scmp.ne.s32.totalorder %s138, %s141
      %p147 = scmp.eq.s32.totalorder %s18, 0
      %p148 = por %p146, %p147
      %p149 = scmp.ne.s32.totalorder %s138, %s141
      %p150 = scmp.eq.s32.totalorder %s23, 1
      %p151 = por %p149, %p150
      %p152 = scmp.ne.s32.totalorder %s141, %s142
      %p153 = scmp.eq.s32.totalorder %s23, 0
      %p154 = por %p152, %p153
      %p155 = scmp.ne.s32.totalorder %s141, %s142
      %p156 = scmp.eq.s32.totalorder %s24, 1
      %p157 = por %p155, %p156
      %p159 = scmp.ne.s32.totalorder %s142, %s158
      %p160 = scmp.eq.s32.totalorder %s24, 0
      %p161 = por %p159, %p160
      %p162 = scmp.le.s32.totalorder 1, %s18
      %p163 = scmp.lt.s32.totalorder %s18, 3
      %p164 = pnand %p162, %p163
      %p165 = pneg %p164
      // Predicated region
      $region9: #{tpu_custom_call.1} parent=5 // pred_check
        _
      $region10: #{tpu_custom_call.1} parent=5 // pred_check_branch
        %167 = sbr.rel (%p164) target = $region12
      $region11: #{tpu_custom_call.1} parent=5 // pred_region
        %s168 = ssub.s32 %s18, 1
        // Predicated region
        $region13: #{tpu_custom_call.1} parent=11 // pred_check
          %p169 = pneg %p65
        $region14: #{tpu_custom_call.1} parent=11 // pred_check_branch
          %171 = sbr.rel (%p169) target = $region16
        $region15: #{tpu_custom_call.1} parent=11 // pred_region
          %173 = vsyncadd [#allocation6], 0
          %s174 = sshll.u32 %s1, 4
          %s175 = int_to_ptr.hbm [resolvable:$true] %s174
          %s176 = sshll.u32 [#allocation5], 4
          %s177 = int_to_ptr.vmem [resolvable:$true] %s176
          %182 = dma.hbm_to_vmem [thread:$0]  %s175, 1024, %s177, [#allocation6], 64, 64, 4
        $region16: #{tpu_custom_call.1} parent=11 // pred_fallthru
          _
        // Predicated region
        $region17: #{tpu_custom_call.1} parent=11 // pred_check
          %p183 = pneg %p86
        $region18: #{tpu_custom_call.1} parent=11 // pred_check_branch
          %185 = sbr.rel (%p183) target = $region20
        $region19: #{tpu_custom_call.1} parent=11 // pred_region
          _
        $region20: #{tpu_custom_call.1} parent=11 // pred_fallthru
          _
        // Predicated region
        $region21: #{tpu_custom_call.1} parent=11 // pred_check
          %p186 = pneg %p107
        $region22: #{tpu_custom_call.1} parent=11 // pred_check_branch
          %188 = sbr.rel (%p186) target = $region24
        $region23: #{tpu_custom_call.1} parent=11 // pred_region
          %190 = vsyncadd [#allocation6], 0
          %s191 = sshll.u32 %s3, 4
          %s192 = int_to_ptr.hbm [resolvable:$true] %s191
          %s193 = sshll.u32 [#allocation7], 4
          %s194 = int_to_ptr.vmem [resolvable:$true] %s193
          %199 = dma.hbm_to_vmem [thread:$0]  %s192, 1024, %s194, [#allocation6], 64, 64, 4
        $region24: #{tpu_custom_call.1} parent=11 // pred_fallthru
          _
        // Predicated region
        $region25: #{tpu_custom_call.1} parent=11 // pred_check
          %p200 = pneg %p128
        $region26: #{tpu_custom_call.1} parent=11 // pred_check_branch
          %202 = sbr.rel (%p200) target = $region28
        $region27: #{tpu_custom_call.1} parent=11 // pred_region
          _
        $region28: #{tpu_custom_call.1} parent=11 // pred_fallthru
          _
      $region12: #{tpu_custom_call.1} parent=5 // pred_fallthru
        _
      %p203 = scmp.lt.s32.totalorder %s18, 2
      // Predicated region
      $region29: #{tpu_custom_call.1} parent=5 // pred_check
        %p204 = pneg %p203
      $region30: #{tpu_custom_call.1} parent=5 // pred_check_branch
        %206 = sbr.rel (%p204) target = $region32
      $region31: #{tpu_custom_call.1} parent=5 // pred_region
        // Predicated region
        $region33: #{tpu_custom_call.1} parent=31 // pred_check
          %p207 = pneg %p38
        $region34: #{tpu_custom_call.1} parent=31 // pred_check_branch
          %209 = sbr.rel (%p207) target = $region36
        $region35: #{tpu_custom_call.1} parent=31 // pred_region
          %s210 = sand.u32 %s28, 1
          %s211 = scalar_lea.sflag [#allocation3], %s210
          %s212 = sand.u32 %s28, 1
          %s213 = smul.addr %s212, 8
          %s214 = scalar_lea.vmem [#allocation2], %s213
          %216 = vsyncadd %s211, 0
          %s217 = smul.addr %s18, 8
          %s218 = scalar_lea.hbm %s0, %s217
          %s220 = sshll.u32 %s218, 4
          %s221 = int_to_ptr.hbm [resolvable:$true] %s220
          %s222 = sshll.u32 %s214, 4
          %s223 = int_to_ptr.vmem [resolvable:$true] %s222
          %225 = dma.hbm_to_vmem [thread:$0]  %s221, 128, %s223, %s211
        $region36: #{tpu_custom_call.1} parent=31 // pred_fallthru
          _
      $region32: #{tpu_custom_call.1} parent=5 // pred_fallthru
        _
      %p226 = scmp.le.s32.totalorder 1, %s18
      %p227 = scmp.lt.s32.totalorder %s18, 3
      %p228 = pnand %p226, %p227
      %p229 = pneg %p228
      // Predicated region
      $region37: #{tpu_custom_call.1} parent=5 // pred_check
        _
      $region38: #{tpu_custom_call.1} parent=5 // pred_check_branch
        %231 = sbr.rel (%p228) target = $region40
      $region39: #{tpu_custom_call.1} parent=5 // pred_region
        %s232 = ssub.s32 %s18, 1
        %s233 = sand.u32 %s31, 1
        %s234 = scalar_lea.sflag [#allocation3], %s233
        %s235 = sand.u32 %s31, 1
        %s236 = smul.addr %s235, 8
        %s237 = scalar_lea.vmem [#allocation2], %s236
        // Predicated region
        $region41: #{tpu_custom_call.1} parent=39 // pred_check
          %p238 = pneg %p44
        $region42: #{tpu_custom_call.1} parent=39 // pred_check_branch
          %240 = sbr.rel (%p238) target = $region44
        $region43: #{tpu_custom_call.1} parent=39 // pred_region
          %242 = dma.done %s234, 128
        $region44: #{tpu_custom_call.1} parent=39 // pred_fallthru
          _
        // Predicated region
        $region45: #{tpu_custom_call.1} parent=39 // pred_check
          %p243 = pneg %p65
        $region46: #{tpu_custom_call.1} parent=39 // pred_check_branch
          %245 = sbr.rel (%p243) target = $region48
        $region47: #{tpu_custom_call.1} parent=39 // pred_region
          %247 = dma.done [#allocation6], 1024
        $region48: #{tpu_custom_call.1} parent=39 // pred_fallthru
          _
        // Predicated region
        $region49: #{tpu_custom_call.1} parent=39 // pred_check
          %p248 = pneg %p107
        $region50: #{tpu_custom_call.1} parent=39 // pred_check_branch
          %250 = sbr.rel (%p248) target = $region52
        $region51: #{tpu_custom_call.1} parent=39 // pred_region
          %252 = dma.done [#allocation6], 1024
        $region52: #{tpu_custom_call.1} parent=39 // pred_fallthru
          _
        %s253 = sand.u32 %s31, 1
        %s254 = scalar_lea.sflag [#allocation3], %s253
        %s255 = sand.u32 %s31, 1
        %s256 = smul.addr %s255, 8
        %s257 = scalar_lea.vmem [#allocation2], %s256
        %p258 = pneg %p44
        %p259 = pneg %p41
        %p260 = pneg %p65
        %p261 = pneg %p62
        %p262 = pneg %p86
        %p263 = pneg %p83
        %p264 = pneg %p107
        %p265 = pneg %p104
        %p266 = pneg %p128
        %p267 = pneg %p125
        %p268 = pneg %p154
        %p269 = pneg %p151
        %s270 = sand.u32 %s141, 1
        %s271 = scalar_lea.sflag [#allocation4], %s270
        %s272 = sand.u32 %s141, 1
        %s273 = smul.addr %s272, 8
        %s274 = scalar_lea.vmem [#allocation8], %s273
        %v275 = vld [vmem:[%s237] sm:$0xff]
        %v276 = vpack.c.bf16 %v275, %v275
        %v277 = vld [vmem:[#allocation5] sm:$0xf]
        %v278 = vld [vmem:[#allocation5 + $0x4] sm:$0xf]
        %v279 = vld [vmem:[#allocation5 + $0x8] sm:$0xf]
        %v280 = vld [vmem:[#allocation5 + $0xc] sm:$0xf]
        %v281 = vld [vmem:[#allocation5 + $0x10] sm:$0xf]
        %v282 = vld [vmem:[#allocation5 + $0x14] sm:$0xf]
        %v283 = vld [vmem:[#allocation5 + $0x18] sm:$0xf]
        %v284 = vld [vmem:[#allocation5 + $0x1c] sm:$0xf]
        %v285 = vld [vmem:[#allocation5 + $0x20] sm:$0xf]
        %v286 = vld [vmem:[#allocation5 + $0x24] sm:$0xf]
        %v287 = vld [vmem:[#allocation5 + $0x28] sm:$0xf]
        %v288 = vld [vmem:[#allocation5 + $0x2c] sm:$0xf]
        %v289 = vld [vmem:[#allocation5 + $0x30] sm:$0xf]
        %v290 = vld [vmem:[#allocation5 + $0x34] sm:$0xf]
        %v291 = vld [vmem:[#allocation5 + $0x38] sm:$0xf]
        %v292 = vld [vmem:[#allocation5 + $0x3c] sm:$0xf]
        %v293 = vld [vmem:[%s2] sm:$0x1]
        %v295 = vperm.slane %v293, 0
        %v313 = vunpack.c.l.b16 %v277
        %v314 = vunpack.c.l.b16 %v278
        %v315 = vunpack.c.l.b16 %v279
        %v316 = vunpack.c.l.b16 %v280
        %v317 = vunpack.c.l.b16 %v281
        %v318 = vunpack.c.l.b16 %v282
        %v319 = vunpack.c.l.b16 %v283
        %v320 = vunpack.c.l.b16 %v284
        %v321 = vunpack.c.l.b16 %v285
        %v322 = vunpack.c.l.b16 %v286
        %v323 = vunpack.c.l.b16 %v287
        %v324 = vunpack.c.l.b16 %v288
        %v325 = vunpack.c.l.b16 %v289
        %v326 = vunpack.c.l.b16 %v290
        %v327 = vunpack.c.l.b16 %v291
        %v328 = vunpack.c.l.b16 %v292
        %v329 = vpack.c.b16 %v314, %v313
        %v330 = vpack.c.b16 %v316, %v315
        %v331 = vpack.c.b16 %v318, %v317
        %v332 = vpack.c.b16 %v320, %v319
        %v333 = vpack.c.b16 %v322, %v321
        %v334 = vpack.c.b16 %v324, %v323
        %v335 = vpack.c.b16 %v326, %v325
        %v336 = vpack.c.b16 %v328, %v327
        %345 = vmatpush.bf16.msra.mxu0 %v336
        %346 = vmatpush.bf16.msra.mxu0 %v335
        %347 = vmatpush.bf16.msra.mxu0 %v334
        %348 = vmatpush.bf16.msra.mxu0 %v333
        %349 = vmatpush.bf16.msra.mxu0 %v332
        %350 = vmatpush.bf16.msra.mxu0 %v331
        %351 = vmatpush.bf16.msra.mxu0 %v330
        %352 = vmatpush.bf16.msra.mxu0 %v329
        %353 = vmatmul.bf16.gmra.mxu0 %v276
        %v354 = vpop.f32.mrf.mxu0
        %v355 = vadd.f32 %v295, %v354
        %v356 = vpop.f32.mrf.mxu0
        %357 = vdwg.mxu0
        %v358 = vmax.f32 %v355, 0.0
        %v359 = vpack.c.bf16 %v358, %v358
        %v360 = vld [vmem:[#allocation7] sm:$0xf]
        %v361 = vld [vmem:[#allocation7 + $0x4] sm:$0xf]
        %v362 = vld [vmem:[#allocation7 + $0x8] sm:$0xf]
        %v363 = vld [vmem:[#allocation7 + $0xc] sm:$0xf]
        %v364 = vld [vmem:[#allocation7 + $0x10] sm:$0xf]
        %v365 = vld [vmem:[#allocation7 + $0x14] sm:$0xf]
        %v366 = vld [vmem:[#allocation7 + $0x18] sm:$0xf]
        %v367 = vld [vmem:[#allocation7 + $0x1c] sm:$0xf]
        %v368 = vld [vmem:[#allocation7 + $0x20] sm:$0xf]
        %v369 = vld [vmem:[#allocation7 + $0x24] sm:$0xf]
        %v370 = vld [vmem:[#allocation7 + $0x28] sm:$0xf]
        %v371 = vld [vmem:[#allocation7 + $0x2c] sm:$0xf]
        %v372 = vld [vmem:[#allocation7 + $0x30] sm:$0xf]
        %v373 = vld [vmem:[#allocation7 + $0x34] sm:$0xf]
        %v374 = vld [vmem:[#allocation7 + $0x38] sm:$0xf]
        %v375 = vld [vmem:[#allocation7 + $0x3c] sm:$0xf]
        %v376 = vld [vmem:[%s4] sm:$0x1]
        %v378 = vperm.slane %v376, 0
        %v396 = vunpack.c.l.b16 %v360
        %v397 = vunpack.c.l.b16 %v361
        %v398 = vunpack.c.l.b16 %v362
        %v399 = vunpack.c.l.b16 %v363
        %v400 = vunpack.c.l.b16 %v364
        %v401 = vunpack.c.l.b16 %v365
        %v402 = vunpack.c.l.b16 %v366
        %v403 = vunpack.c.l.b16 %v367
        %v404 = vunpack.c.l.b16 %v368
        %v405 = vunpack.c.l.b16 %v369
        %v406 = vunpack.c.l.b16 %v370
        %v407 = vunpack.c.l.b16 %v371
        %v408 = vunpack.c.l.b16 %v372
        %v409 = vunpack.c.l.b16 %v373
        %v410 = vunpack.c.l.b16 %v374
        %v411 = vunpack.c.l.b16 %v375
        %v412 = vpack.c.b16 %v397, %v396
        %v413 = vpack.c.b16 %v399, %v398
        %v414 = vpack.c.b16 %v401, %v400
        %v415 = vpack.c.b16 %v403, %v402
        %v416 = vpack.c.b16 %v405, %v404
        %v417 = vpack.c.b16 %v407, %v406
        %v418 = vpack.c.b16 %v409, %v408
        %v419 = vpack.c.b16 %v411, %v410
        %428 = vmatpush.bf16.msra.mxu0 %v419
        %429 = vmatpush.bf16.msra.mxu0 %v418
        %430 = vmatpush.bf16.msra.mxu0 %v417
        %431 = vmatpush.bf16.msra.mxu0 %v416
        %432 = vmatpush.bf16.msra.mxu0 %v415
        %433 = vmatpush.bf16.msra.mxu0 %v414
        %434 = vmatpush.bf16.msra.mxu0 %v413
        %435 = vmatpush.bf16.msra.mxu0 %v412
        %436 = vmatmul.bf16.gmra.mxu0 %v359
        %v437 = vpop.f32.mrf.mxu0
        %v438 = vadd.f32 %v378, %v437
        %v439 = vpop.f32.mrf.mxu0
        %440 = vdwg.mxu0
        %441 = vst [vmem:[%s274] sm:$0xff] %v438
        %s442 = sand.u32 %s141, 1
        %s443 = scalar_lea.sflag [#allocation4], %s442
        %s444 = sand.u32 %s141, 1
        %s445 = smul.addr %s444, 8
        %s446 = scalar_lea.vmem [#allocation8], %s445
        // Predicated region
        $region53: #{tpu_custom_call.1} parent=39 // pred_check
          %p447 = pneg %p151
        $region54: #{tpu_custom_call.1} parent=39 // pred_check_branch
          %449 = sbr.rel (%p447) target = $region56
        $region55: #{tpu_custom_call.1} parent=39 // pred_region
          %451 = vsyncadd %s443, 0
          %s452 = smul.addr %s23, 8
          %s453 = scalar_lea.hbm %s5, %s452
          %s455 = sshll.u32 %s446, 4
          %s456 = int_to_ptr.vmem [resolvable:$true] %s455
          %s457 = sshll.u32 %s453, 4
          %s458 = int_to_ptr.hbm [resolvable:$true] %s457
          %460 = dma.vmem_to_hbm [thread:$0]  %s456, 128, %s458, %s443
        $region56: #{tpu_custom_call.1} parent=39 // pred_fallthru
          _
      $region40: #{tpu_custom_call.1} parent=5 // pred_fallthru
        _
      %p461 = scmp.le.s32.totalorder 2, %s18
      // Predicated region
      $region57: #{tpu_custom_call.1} parent=5 // pred_check
        %p462 = pneg %p461
      $region58: #{tpu_custom_call.1} parent=5 // pred_check_branch
        %464 = sbr.rel (%p462) target = $region60
      $region59: #{tpu_custom_call.1} parent=5 // pred_region
        %s465 = ssub.s32 %s18, 2
        // Predicated region
        $region61: #{tpu_custom_call.1} parent=59 // pred_check
          %p466 = pneg %p157
        $region62: #{tpu_custom_call.1} parent=59 // pred_check_branch
          %468 = sbr.rel (%p466) target = $region64
        $region63: #{tpu_custom_call.1} parent=59 // pred_region
          %s469 = sand.u32 %s142, 1
          %s470 = scalar_lea.sflag [#allocation4], %s469
          %s471 = sand.u32 %s142, 1
          %s472 = smul.addr %s471, 8
          %s473 = scalar_lea.vmem [#allocation8], %s472
          %475 = dma.done %s470, 128
        $region64: #{tpu_custom_call.1} parent=59 // pred_fallthru
          _
      $region60: #{tpu_custom_call.1} parent=5 // pred_fallthru
        _
    $region6: #{tpu_custom_call.1} parent=1 // loop_footer
      %s22 = sadd.s32 1, %s18
    $region7: #{tpu_custom_call.1} parent=1 // loop_footer_branch
      %17 = sbr.rel target = $region3
    $region8: #{tpu_custom_call.1} parent=1 // loop_exit
      _
    %476 = vsyncpa [#allocation3], 1
    %s477 = scalar_lea.sflag [#allocation3], 1
    %478 = vsyncpa %s477, 1
    %479 = vsyncpa [#allocation6], 1
    %480 = vsyncpa [#allocation4], 1
    %s481 = scalar_lea.sflag [#allocation4], 1
    %482 = vsyncpa %s481, 1

</llo_original>
